<compile_context>
chip_gen: v5e
topology: v5e:2x2
jax: 0.10.0
libtpu: 0.0.40
codegen_flags: <defaults>
</compile_context>

<pallas_src>
import functools

import jax
import jax.numpy as jnp
from jax.experimental import pallas as pl
from jax.experimental.pallas import tpu as pltpu


# Per-batch-row statistics accumulated by the kernel (lane-concatenated):
#   0: sum(gt)                        (# inliers)
#   1: sum((pred>0) * gt)             (true positives)
#   2: sum(pred>0)                    (predicted positives)
#   3: sum(gt * softplus(-pred))      (positive BCE term, unweighted)
#   4: sum((1-gt) * softplus(pred))   (negative BCE term)
#   5: sum(pred * gt)                 (logit_true numerator)
#   6: sum(pred * (1-gt))             (logit_false numerator)
#   7: sum(mask)                      (# valid correspondences)
#   8: sum(weight * elementwise_bce)  (only in the weight != None variant)

_HARD_CAP_BLOCK_N = 4096
_STREAM_VMEM_BUDGET = 12 * 1024 * 1024  # conservative for v7x's smaller VMEM


def _round_up(x, m):
    return ((x + m - 1) // m) * m


def _stats_kernel(n_ref, *refs, block_n, nb, has_weight):
    if has_weight:
        pred_ref, gt_ref, w_ref, out_ref = refs
    else:
        pred_ref, gt_ref, out_ref = refs
        w_ref = None

    c = pl.program_id(0)
    k = pl.program_id(1)

    @pl.when(k == 0)
    def _():
        out_ref[...] = jnp.zeros_like(out_ref)

    x = pred_ref[...]                       # (bs, block_n) logits
    y = gt_ref[...]                         # (bs, block_n) labels in {0,1}

    # Tail mask built in-kernel (no mask stream in HBM).
    base = (c * pl.num_programs(1) + k) * block_n
    lane = jax.lax.broadcasted_iota(jnp.int32, x.shape, 1)
    m = ((base + lane) < n_ref[0]).astype(jnp.float32)

    ym = y * m                              # valid inliers
    nym = m - ym                            # valid outliers
    pos = jnp.where(x > 0.0, m, 0.0)        # valid predicted positives

    ax = jnp.abs(x)
    log_term = jnp.log(1.0 + jnp.exp(-ax))
    sp_pos = jnp.maximum(x, 0.0) + log_term    # softplus(x)
    sp_neg = jnp.maximum(-x, 0.0) + log_term   # softplus(-x)

    stats = [
        ym,               # 0
        pos * y,          # 1
        pos,              # 2
        ym * sp_neg,      # 3
        nym * sp_pos,     # 4
        x * ym,           # 5
        x * nym,          # 6
        m,                # 7
    ]
    if has_weight:
        stats.append(w_ref[...] * (ym * sp_neg + nym * sp_pos))   # 8

    def lane_partial(t):  # (bs, block_n) -> (bs, 128) via VPU adds only
        r = t[:, 0:128]
        for j in range(1, nb):
            r = r + t[:, j * 128:(j + 1) * 128]
        return r

    packed = jnp.concatenate([lane_partial(t) for t in stats], axis=-1)
    out_ref[...] += packed[None]            # single lane-dense accumulate


def _run_stats(pred, gt, weight):
    """Returns per-batch-row statistics, shape (bs, n_stats)."""
    bs, num_corr = pred.shape
    has_weight = weight is not None
    n_streams = 3 if has_weight else 2
    ns = 9 if has_weight else 8

    # VMEM-budgeted, lane-dense block size (num_corr on the lane axis).
    max_bn = _STREAM_VMEM_BUDGET // (n_streams * 2 * bs * 4)
    max_bn = max(128, (max_bn // 128) * 128)
    block_n = min(_HARD_CAP_BLOCK_N, max_bn, _round_up(num_corr, 128))
    block_n = max(128, (block_n // 128) * 128)
    nb = block_n // 128

    nblocks = _round_up(num_corr, block_n) // block_n
    n_split = 2 if nblocks >= 2 else 1      # feed both v7x TensorCores
    nblocks = _round_up(nblocks, n_split)
    kpb = nblocks // n_split
    n_pad = nblocks * block_n
    pad = n_pad - num_corr

    def prep(a):
        a = jnp.asarray(a, jnp.float32)
        return jnp.pad(a, ((0, 0), (0, pad))) if pad else a

    inputs = [prep(pred), prep(gt)]
    if has_weight:
        inputs.append(prep(weight))

    in_spec = pl.BlockSpec((bs, block_n), lambda c, k, n_ref: (0, c * kpb + k))
    out_spec = pl.BlockSpec((1, bs, ns * 128), lambda c, k, n_ref: (c, 0, 0))

    kern = functools.partial(_stats_kernel, block_n=block_n, nb=nb,
                             has_weight=has_weight)

    part = pl.pallas_call(
        kern,
        out_shape=jax.ShapeDtypeStruct((n_split, bs, ns * 128), jnp.float32),
        grid_spec=pltpu.PrefetchScalarGridSpec(
            num_scalar_prefetch=1,
            grid=(n_split, kpb),
            in_specs=[in_spec] * len(inputs),
            out_specs=out_spec,
        ),
        compiler_params=pltpu.CompilerParams(
            dimension_semantics=("parallel", "arbitrary"),
            vmem_limit_bytes=32 * 1024 * 1024,
        ),
    )(jnp.array([num_corr], jnp.int32), *inputs)

    part = part.reshape(n_split, bs, ns, 128)
    return jnp.sum(part, axis=(0, 3))       # (bs, ns): one cross-lane reduce


@functools.partial(jax.jit, static_argnames=("balanced",))
def _classification_loss_impl(pred, gt, weight, balanced):
    has_weight = weight is not None
    stats = _run_stats(pred, gt, weight)

    sum_gt = stats[:, 0]
    tp = stats[:, 1]
    pp = stats[:, 2]
    s1 = stats[:, 3]
    s0 = stats[:, 4]
    lt = stats[:, 5]
    lf = stats[:, 6]
    cnt = stats[:, 7]

    total = jnp.sum(cnt)                    # bs * num_corr
    total_gt = jnp.sum(sum_gt)
    num_pos = jnp.maximum(total_gt - 1.0, 0.0) + 1.0
    num_neg = jnp.maximum((total - total_gt) - 1.0, 0.0) + 1.0

    if has_weight:
        # matches torch: mean(BCEWithLogits(reduction='none') * weight), no pos_weight
        loss = jnp.sum(stats[:, 8]) / total
    elif not balanced:
        loss = (jnp.sum(s1) + jnp.sum(s0)) / total
    else:
        loss = ((num_neg / num_pos) * jnp.sum(s1) + jnp.sum(s0)) / total

    # sklearn-style binary precision / recall / f1 per batch row (zero_division=0)
    prec = jnp.where(pp > 0, tp / jnp.maximum(pp, 1.0), 0.0)
    rec = jnp.where(sum_gt > 0, tp / jnp.maximum(sum_gt, 1.0), 0.0)
    denom = prec + rec
    f1 = jnp.where(denom > 0, 2.0 * prec * rec / jnp.maximum(denom, 1e-30), 0.0)

    logit_true = lt / jnp.maximum(sum_gt, 1.0)
    logit_false = lf / jnp.maximum(cnt - sum_gt, 1.0)

    scalars = jnp.stack([jnp.mean(prec), jnp.mean(rec), jnp.mean(f1),
                         jnp.mean(logit_true), jnp.mean(logit_false)])
    return loss, scalars


def classification_loss(pred, gt, weight=None, balanced=True):
    """JAX/Pallas port of ClassificationLoss.forward; pred/gt: [bs, num_corr]."""
    pred = jnp.asarray(pred, jnp.float32)
    gt = jnp.asarray(gt, jnp.float32)
    w = None if weight is None else jnp.asarray(weight, jnp.float32)
    loss, scalars = _classification_loss_impl(pred, gt, w, balanced=balanced)
    scalars = jax.device_get(scalars)       # single host transfer for the floats
    return {
        "loss": loss,
        "precision": float(scalars[0]),
        "recall": float(scalars[1]),
        "f1": float(scalars[2]),
        "logit_true": float(scalars[3]),
        "logit_false": float(scalars[4]),
    }


if __name__ == "__main__":
    key = jax.random.PRNGKey(0)
    bs, num_corr = 2, 300
    k1, k2, k3 = jax.random.split(key, 3)
    pred = 2.0 * jax.random.normal(k1, (bs, num_corr), dtype=jnp.float32)
    gt = (jax.random.uniform(k2, (bs, num_corr)) > 0.7).astype(jnp.float32)
    weight = jax.random.uniform(k3, (bs, num_corr), dtype=jnp.float32)

    out = classification_loss(pred, gt, balanced=True)
    jax.block_until_ready(out["loss"])

    # --- pure-JAX references ---
    sp = jax.nn.softplus
    num_pos = jnp.maximum(jnp.sum(gt) - 1.0, 0.0) + 1.0
    num_neg = jnp.maximum(jnp.sum(1.0 - gt) - 1.0, 0.0) + 1.0
    pw = num_neg / num_pos
    ref_loss = float(jnp.mean(pw * gt * sp(-pred) + (1.0 - gt) * sp(pred)))
    assert abs(float(out["loss"]) - ref_loss) < 1e-4, (float(out["loss"]), ref_loss)

    pred_l = (pred > 0).astype(jnp.float32)
    tp = jnp.sum(pred_l * gt, axis=1)
    pp = jnp.sum(pred_l, axis=1)
    ap = jnp.sum(gt, axis=1)
    prec_ref = float(jnp.mean(jnp.where(pp > 0, tp / jnp.maximum(pp, 1.0), 0.0)))
    rec_ref = float(jnp.mean(jnp.where(ap > 0, tp / jnp.maximum(ap, 1.0), 0.0)))
    lt_ref = float(jnp.mean(jnp.sum(pred * gt, axis=1) / jnp.maximum(ap, 1.0)))
    lf_ref = float(jnp.mean(jnp.sum(pred * (1.0 - gt), axis=1)
                            / jnp.maximum(num_corr - ap, 1.0)))
    assert abs(out["precision"] - prec_ref) < 1e-5
    assert abs(out["recall"] - rec_ref) < 1e-5
    assert abs(out["logit_true"] - lt_ref) < 1e-4
    assert abs(out["logit_false"] - lf_ref) < 1e-4

    # weighted path (exercises the 9-stat kernel variant)
    out_w = classification_loss(pred, gt, weight=weight)
    jax.block_until_ready(out_w["loss"])
    ref_w = float(jnp.mean(weight * (gt * sp(-pred) + (1.0 - gt) * sp(pred))))
    assert abs(float(out_w["loss"]) - ref_w) < 1e-4, (float(out_w["loss"]), ref_w)

    print("KERNEL_OK")
</pallas_src>

<mosaic_0001>
module attributes {stable_mosaic.version = 11 : i64} {
  func.func @_stats_kernel(%arg0: i32, %arg1: i32, %arg2: memref<1xi32, #tpu.memory_space<smem>>, %arg3: memref<2x384xf32, #tpu.memory_space<vmem>>, %arg4: memref<2x384xf32, #tpu.memory_space<vmem>>, %arg5: memref<1x2x1024xf32, #tpu.memory_space<vmem>>) attributes {dimension_semantics = [#tpu.dimension_semantics<parallel>, #tpu.dimension_semantics<arbitrary>], iteration_bounds = array<i64: 1, 1>, scalar_prefetch = 1 : i64, scratch_operands = 0 : i64, tpu.core_type = #tpu.core_type<tc>, window_params = [{transform_indices = @transform_0, window_bounds = array<i64: 2, 384>}, {transform_indices = @transform_1, window_bounds = array<i64: 2, 384>}, {transform_indices = @transform_2, window_bounds = array<i64: 1, 2, 1024>}]} {
    %c0_i32 = arith.constant 0 : i32
    %0 = arith.cmpi eq, %arg1, %c0_i32 : i32
    %1 = arith.extui %0 : i1 to i32
    %c0_i32_0 = arith.constant 0 : i32
    %2 = arith.cmpi ne, %1, %c0_i32_0 : i32
    scf.if %2 {
      %cst_17 = arith.constant 0.000000e+00 : f32
      %87 = vector.broadcast %cst_17 : f32 to vector<1x2x1024xf32>
      %c0_18 = arith.constant 0 : index
      %c0_19 = arith.constant 0 : index
      %c0_20 = arith.constant 0 : index
      %88 = vector.load %arg5[%c0_18, %c0_19, %c0_20] : memref<1x2x1024xf32, #tpu.memory_space<vmem>>, vector<1x2x1024xf32>
      tpu.vector_store %arg5[%c0_18, %c0_19, %c0_20], %87 {strides = array<i32>} : memref<1x2x1024xf32, #tpu.memory_space<vmem>>, vector<1x2x1024xf32>,
    } else {
    }
    %c0 = arith.constant 0 : index
    %c0_1 = arith.constant 0 : index
    %3 = vector.load %arg3[%c0, %c0_1] : memref<2x384xf32, #tpu.memory_space<vmem>>, vector<2x384xf32>
    %c0_2 = arith.constant 0 : index
    %c0_3 = arith.constant 0 : index
    %4 = vector.load %arg4[%c0_2, %c0_3] : memref<2x384xf32, #tpu.memory_space<vmem>>, vector<2x384xf32>
    %c1_i32 = arith.constant 1 : i32
    %5 = arith.muli %arg0, %c1_i32 : i32
    %6 = arith.addi %5, %arg1 : i32
    %c384_i32 = arith.constant 384 : i32
    %7 = arith.muli %6, %c384_i32 : i32
    %8 = tpu.iota {dimensions = array<i32: 1>} : vector<2x384xi32>
    %9 = vector.broadcast %7 : i32 to vector<2x384xi32>
    %10 = arith.addi %9, %8 : vector<2x384xi32>
    %c0_4 = arith.constant 0 : index
    %11 = memref.load %arg2[%c0_4] : memref<1xi32, #tpu.memory_space<smem>>
    %12 = vector.broadcast %11 : i32 to vector<2x384xi32>
    %13 = arith.cmpi slt, %10, %12 : vector<2x384xi32>
    %14 = arith.extui %13 : vector<2x384xi1> to vector<2x384xi32>
    %15 = arith.sitofp %14 : vector<2x384xi32> to vector<2x384xf32>
    %16 = arith.mulf %4, %15 : vector<2x384xf32>
    %17 = arith.subf %15, %16 : vector<2x384xf32>
    %cst = arith.constant 0.000000e+00 : f32
    %18 = vector.broadcast %cst : f32 to vector<2x384xf32>
    %19 = arith.cmpf ogt, %3, %18 : vector<2x384xf32>
    %cst_5 = arith.constant 0.000000e+00 : f32
    %20 = vector.broadcast %cst_5 : f32 to vector<2x384xf32>
    %21 = arith.select %19, %15, %20 : vector<2x384xi1>, vector<2x384xf32>
    %22 = math.absf %3 : vector<2x384xf32>
    %cst_6 = arith.constant 0.000000e+00 : f32
    %23 = vector.broadcast %cst_6 : f32 to vector<2x384xf32>
    %24 = arith.subf %23, %22 : vector<2x384xf32>
    %25 = math.exp %24 : vector<2x384xf32>
    %cst_7 = arith.constant 1.000000e+00 : f32
    %26 = vector.broadcast %cst_7 : f32 to vector<2x384xf32>
    %27 = arith.addf %26, %25 : vector<2x384xf32>
    %28 = math.log %27 : vector<2x384xf32>
    %cst_8 = arith.constant 0.000000e+00 : f32
    %29 = vector.broadcast %cst_8 : f32 to vector<2x384xf32>
    %30 = arith.maximumf %3, %29 : vector<2x384xf32>
    %31 = arith.addf %30, %28 : vector<2x384xf32>
    %cst_9 = arith.constant 0.000000e+00 : f32
    %32 = vector.broadcast %cst_9 : f32 to vector<2x384xf32>
    %33 = arith.subf %32, %3 : vector<2x384xf32>
    %cst_10 = arith.constant 0.000000e+00 : f32
    %34 = vector.broadcast %cst_10 : f32 to vector<2x384xf32>
    %35 = arith.maximumf %33, %34 : vector<2x384xf32>
    %36 = arith.addf %35, %28 : vector<2x384xf32>
    %37 = arith.mulf %21, %4 : vector<2x384xf32>
    %38 = arith.mulf %16, %36 : vector<2x384xf32>
    %39 = arith.mulf %17, %31 : vector<2x384xf32>
    %40 = arith.mulf %3, %16 : vector<2x384xf32>
    %41 = arith.mulf %3, %17 : vector<2x384xf32>
    %42 = vector.extract_strided_slice %16 {offsets = [0, 0], sizes = [2, 128], strides = [1, 1]} : vector<2x384xf32> to vector<2x128xf32>
    %43 = vector.extract_strided_slice %16 {offsets = [0, 128], sizes = [2, 128], strides = [1, 1]} : vector<2x384xf32> to vector<2x128xf32>
    %44 = arith.addf %42, %43 : vector<2x128xf32>
    %45 = vector.extract_strided_slice %16 {offsets = [0, 256], sizes = [2, 128], strides = [1, 1]} : vector<2x384xf32> to vector<2x128xf32>
    %46 = arith.addf %44, %45 : vector<2x128xf32>
    %47 = vector.extract_strided_slice %37 {offsets = [0, 0], sizes = [2, 128], strides = [1, 1]} : vector<2x384xf32> to vector<2x128xf32>
    %48 = vector.extract_strided_slice %37 {offsets = [0, 128], sizes = [2, 128], strides = [1, 1]} : vector<2x384xf32> to vector<2x128xf32>
    %49 = arith.addf %47, %48 : vector<2x128xf32>
    %50 = vector.extract_strided_slice %37 {offsets = [0, 256], sizes = [2, 128], strides = [1, 1]} : vector<2x384xf32> to vector<2x128xf32>
    %51 = arith.addf %49, %50 : vector<2x128xf32>
    %52 = vector.extract_strided_slice %21 {offsets = [0, 0], sizes = [2, 128], strides = [1, 1]} : vector<2x384xf32> to vector<2x128xf32>
    %53 = vector.extract_strided_slice %21 {offsets = [0, 128], sizes = [2, 128], strides = [1, 1]} : vector<2x384xf32> to vector<2x128xf32>
    %54 = arith.addf %52, %53 : vector<2x128xf32>
    %55 = vector.extract_strided_slice %21 {offsets = [0, 256], sizes = [2, 128], strides = [1, 1]} : vector<2x384xf32> to vector<2x128xf32>
    %56 = arith.addf %54, %55 : vector<2x128xf32>
    %57 = vector.extract_strided_slice %38 {offsets = [0, 0], sizes = [2, 128], strides = [1, 1]} : vector<2x384xf32> to vector<2x128xf32>
    %58 = vector.extract_strided_slice %38 {offsets = [0, 128], sizes = [2, 128], strides = [1, 1]} : vector<2x384xf32> to vector<2x128xf32>
    %59 = arith.addf %57, %58 : vector<2x128xf32>
    %60 = vector.extract_strided_slice %38 {offsets = [0, 256], sizes = [2, 128], strides = [1, 1]} : vector<2x384xf32> to vector<2x128xf32>
    %61 = arith.addf %59, %60 : vector<2x128xf32>
    %62 = vector.extract_strided_slice %39 {offsets = [0, 0], sizes = [2, 128], strides = [1, 1]} : vector<2x384xf32> to vector<2x128xf32>
    %63 = vector.extract_strided_slice %39 {offsets = [0, 128], sizes = [2, 128], strides = [1, 1]} : vector<2x384xf32> to vector<2x128xf32>
    %64 = arith.addf %62, %63 : vector<2x128xf32>
    %65 = vector.extract_strided_slice %39 {offsets = [0, 256], sizes = [2, 128], strides = [1, 1]} : vector<2x384xf32> to vector<2x128xf32>
    %66 = arith.addf %64, %65 : vector<2x128xf32>
    %67 = vector.extract_strided_slice %40 {offsets = [0, 0], sizes = [2, 128], strides = [1, 1]} : vector<2x384xf32> to vector<2x128xf32>
    %68 = vector.extract_strided_slice %40 {offsets = [0, 128], sizes = [2, 128], strides = [1, 1]} : vector<2x384xf32> to vector<2x128xf32>
    %69 = arith.addf %67, %68 : vector<2x128xf32>
    %70 = vector.extract_strided_slice %40 {offsets = [0, 256], sizes = [2, 128], strides = [1, 1]} : vector<2x384xf32> to vector<2x128xf32>
    %71 = arith.addf %69, %70 : vector<2x128xf32>
    %72 = vector.extract_strided_slice %41 {offsets = [0, 0], sizes = [2, 128], strides = [1, 1]} : vector<2x384xf32> to vector<2x128xf32>
    %73 = vector.extract_strided_slice %41 {offsets = [0, 128], sizes = [2, 128], strides = [1, 1]} : vector<2x384xf32> to vector<2x128xf32>
    %74 = arith.addf %72, %73 : vector<2x128xf32>
    %75 = vector.extract_strided_slice %41 {offsets = [0, 256], sizes = [2, 128], strides = [1, 1]} : vector<2x384xf32> to vector<2x128xf32>
    %76 = arith.addf %74, %75 : vector<2x128xf32>
    %77 = vector.extract_strided_slice %15 {offsets = [0, 0], sizes = [2, 128], strides = [1, 1]} : vector<2x384xf32> to vector<2x128xf32>
    %78 = vector.extract_strided_slice %15 {offsets = [0, 128], sizes = [2, 128], strides = [1, 1]} : vector<2x384xf32> to vector<2x128xf32>
    %79 = arith.addf %77, %78 : vector<2x128xf32>
    %80 = vector.extract_strided_slice %15 {offsets = [0, 256], sizes = [2, 128], strides = [1, 1]} : vector<2x384xf32> to vector<2x128xf32>
    %81 = arith.addf %79, %80 : vector<2x128xf32>
    %82 = tpu.concatenate %46, %51, %56, %61, %66, %71, %76, %81 in 1 : vector<2x128xf32>, vector<2x128xf32>, vector<2x128xf32>, vector<2x128xf32>, vector<2x128xf32>, vector<2x128xf32>, vector<2x128xf32>, vector<2x128xf32> -> vector<2x1024xf32>
    %c0_11 = arith.constant 0 : index
    %c0_12 = arith.constant 0 : index
    %c0_13 = arith.constant 0 : index
    %83 = vector.load %arg5[%c0_11, %c0_12, %c0_13] : memref<1x2x1024xf32, #tpu.memory_space<vmem>>, vector<1x2x1024xf32>
    %84 = vector.shape_cast %82 : vector<2x1024xf32> to vector<1x2x1024xf32>
    %85 = arith.addf %83, %84 : vector<1x2x1024xf32>
    %c0_14 = arith.constant 0 : index
    %c0_15 = arith.constant 0 : index
    %c0_16 = arith.constant 0 : index
    %86 = vector.load %arg5[%c0_14, %c0_15, %c0_16] : memref<1x2x1024xf32, #tpu.memory_space<vmem>>, vector<1x2x1024xf32>
    tpu.vector_store %arg5[%c0_14, %c0_15, %c0_16], %85 {strides = array<i32>} : memref<1x2x1024xf32, #tpu.memory_space<vmem>>, vector<1x2x1024xf32>,
    return
  }
  func.func @transform_0(%arg0: i32, %arg1: i32, %arg2: memref<1xi32, #tpu.memory_space<smem>>) -> (i32, i32) {
    %c1_i32 = arith.constant 1 : i32
    %0 = arith.muli %arg0, %c1_i32 : i32
    %1 = arith.addi %0, %arg1 : i32
    %c0_i32 = arith.constant 0 : i32
    %c0_i32_0 = arith.constant 0 : i32
    return %c0_i32, %1 : i32, i32
  }
  func.func @transform_1(%arg0: i32, %arg1: i32, %arg2: memref<1xi32, #tpu.memory_space<smem>>) -> (i32, i32) {
    %c1_i32 = arith.constant 1 : i32
    %0 = arith.muli %arg0, %c1_i32 : i32
    %1 = arith.addi %0, %arg1 : i32
    %c0_i32 = arith.constant 0 : i32
    %c0_i32_0 = arith.constant 0 : i32
    return %c0_i32, %1 : i32, i32
  }
  func.func @transform_2(%arg0: i32, %arg1: i32, %arg2: memref<1xi32, #tpu.memory_space<smem>>) -> (i32, i32, i32) {
    %c0_i32 = arith.constant 0 : i32
    %c0_i32_0 = arith.constant 0 : i32
    %c0_i32_1 = arith.constant 0 : i32
    return %arg0, %c0_i32, %c0_i32_0 : i32, i32, i32
  }
}

</mosaic_0001>

<llo_original>
// kernel: _classification_loss_impl.1
$region0: #{_classification_loss_impl.1}
  #allocation0 [shape = 'u32[]', space=smem, size = 0x4, offset = 0x4, fixed_abs, tag = 'smem constant byte address 0x4 - core index']
  #allocation1 [shape = 'u32[72,128]{1,0:T(1,128)}', space=vmem, size = 0x9000, scoped, tag = 'internal scratch']
  #allocation2 [shape = 's32[1]{0}', space=sflag, size = 0x4, scoped, tag = 'scoped memory for _classification_loss_impl.1']
  #allocation3 [shape = 's32[1]{0:T(128)S(6)}', space=smem, size = 0x200, scoped, tag = 'prefetched SMEM operand 0']
  %s0 = inlined_call_operand.<no memory space> [shape: s32[1], index: 0, kind: input, shape index: {}]
  %s1 = inlined_call_operand.vmem [shape: f32[2,384], index: 1, kind: input, shape index: {}]
  %s2 = inlined_call_operand.vmem [shape: f32[2,384], index: 2, kind: input, shape index: {}]
  %s3 = inlined_call_operand.vmem [shape: f32[1,2,1024], index: 3, kind: output, shape index: {}]
  %s4 = sld [smem:[#allocation0]]
  $region22: #{_classification_loss_impl.1} parent=0
    _
  %s6 = ssub.s32 1, %s4
  %s7 = scalar_select 0, %s6, %s4
  %8 = sst [smem:[#allocation3]] %s0
  // Predicated region
  $region2: #{_classification_loss_impl.1} parent=0 // pred_check
    _
  $region3: #{_classification_loss_impl.1} parent=0 // pred_check_branch
    %10 = sbr.rel (0) target = $region5
  $region4: #{_classification_loss_impl.1} parent=0 // pred_region
    %s11 = sadd.s32 0, 0
    %s12 = smul.u32 3, %s11
    %p13 = scmp.lt.s32.totalorder %s12, 2
    %s14 = scalar_select %p13, %s12, 2
    %s15 = smul.addr %s14, 2
    %s16 = scalar_lea.vmem %s1, %s15
    %s17 = sadd.s32 0, 0
    %s18 = smul.u32 3, %s17
  $region5: #{_classification_loss_impl.1} parent=0 // pred_fallthru
    _
  // Predicated region
  $region6: #{_classification_loss_impl.1} parent=0 // pred_check
    _
  $region7: #{_classification_loss_impl.1} parent=0 // pred_check_branch
    %20 = sbr.rel (0) target = $region9
  $region8: #{_classification_loss_impl.1} parent=0 // pred_region
    %s21 = sadd.s32 0, 0
    %s22 = smul.u32 3, %s21
    %p23 = scmp.lt.s32.totalorder %s22, 2
    %s24 = scalar_select %p23, %s22, 2
    %s25 = smul.addr %s24, 2
    %s26 = scalar_lea.vmem %s2, %s25
    %s27 = sadd.s32 0, 0
    %s28 = smul.u32 3, %s27
  $region9: #{_classification_loss_impl.1} parent=0 // pred_fallthru
    _
  %s29 = sadd.s32 0, 0
  %s30 = smul.u32 3, %s29
  %p31 = scmp.lt.s32.totalorder %s30, 2
  %s32 = scalar_select %p31, %s30, 2
  %s33 = smul.addr %s32, 2
  %s34 = scalar_lea.vmem %s1, %s33
  %s35 = sadd.s32 0, 0
  %s36 = smul.u32 3, %s35
  %p37 = scmp.lt.s32.totalorder %s36, 2
  %s38 = scalar_select %p37, %s36, 2
  %s39 = smul.addr %s38, 2
  %s40 = scalar_lea.vmem %s2, %s39
  %s41 = sadd.s32 0, 0
  %s42 = smul.u32 3, %s41
  %p43 = scmp.lt.s32.totalorder %s42, 2
  %s44 = scalar_select %p43, %s42, 2
  %s45 = smul.addr %s44, 2
  %s46 = scalar_lea.vmem %s1, %s45
  %s47 = sadd.s32 0, 0
  %s48 = smul.u32 3, %s47
  %s49 = sadd.s32 0, 0
  %s50 = smul.u32 3, %s49
  %p51 = scmp.lt.s32.totalorder %s50, 2
  %s52 = scalar_select %p51, %s50, 2
  %s53 = smul.addr %s52, 2
  %s54 = scalar_lea.vmem %s2, %s53
  %s55 = sadd.s32 0, 0
  %s56 = smul.u32 3, %s55
  %p57 = scmp.eq.s32.totalorder 0, 0
  // Predicated region
  $region10: #{_classification_loss_impl.1} parent=0 // pred_check
    %p58 = pneg %p57
  $region11: #{_classification_loss_impl.1} parent=0 // pred_check_branch
    %60 = sbr.rel (%p58) target = $region13
  $region12: #{_classification_loss_impl.1} parent=0 // pred_region
    %61 = vst [vmem:[%s3] sm:$0xff] 0.0
    %62 = vst [vmem:[%s3 + $0x8] sm:$0xff] 0.0
  $region13: #{_classification_loss_impl.1} parent=0 // pred_fallthru
    _
  %v63 = vld [vmem:[%s46] sm:$0x3f]
  %v64 = vld [vmem:[%s54] sm:$0x3f]
  %s65 = sadd.s32 0, 0
  %s66 = smul.u32 %s65, 384
  %v67 = vlaneseq
  %v68 = vand.u32 %v67, 127
  %v69 = vadd.s32 %v68, 128
  %v70 = vadd.s32 %v68, 256
  %v71 = vstv %s66
  %v72 = vadd.s32 %v71, %v68
  %v73 = vadd.s32 %v71, %v69
  %v74 = vadd.s32 %v71, %v70
  %s75 = sld [smem:[#allocation3]]
  %v76 = vstv %s75
  %vm77 = vcmp.lt.s32.totalorder %v72, %v76
  %vm78 = vcmp.lt.s32.totalorder %v73, %v76
  %vm79 = vcmp.lt.s32.totalorder %v74, %v76
  %v80 = vsel %vm77, 1, 0
  %v81 = vsel %vm78, 1, 0
  %v82 = vsel %vm79, 1, 0
  %v83 = vcvt.s32.f32 %v80
  %v84 = vcvt.s32.f32 %v81
  %v85 = vcvt.s32.f32 %v82
  %v89 = vrot.slane %v84, 6
  %v90 = vrot.slane %v85, 4
  %vm91 = vcmask 1041408
  %v92 = vsel %vm91, %v83, %v89
  %vm93 = vcmask 1043456
  %v94 = vsel %vm93, %v92, %v90
  %v96 = vmul.f32 %v64, %v94
  %98 = vst [vmem:[#allocation1] ss:$4 sm:$0xff] %v96
  %v99 = vld.sshfl [vmem:[#allocation1] sm:$0xff pattern:$0x73625140]
  %v100 = vld.sshfl [vmem:[#allocation1 + $0x8] sm:$0xff pattern:$0x73625140]
  %v101 = vld.sshfl [vmem:[#allocation1 + $0x10] sm:$0xff pattern:$0x73625140]
  %v105 = vsub.f32 %v83, %v99
  %v106 = vsub.f32 %v84, %v100
  %v107 = vsub.f32 %v85, %v101
  %vm108 = vcmp.gt.f32.partialorder %v63, 0.0
  %v109 = vsel %vm108, %v94, 0.0
  %v110 = vand.u32 2147483647, %v63
  %v111 = vsub.f32 0.0, %v110
  %v112 = vmul.f32 %v111, 1.442695
  %v113 = vpow.pop %v112
  %v114 = vadd.f32 %v113, 1.0
  %v115 = vlog2.pop %v114
  %v116 = vmul.f32 %v115, 0.6931472
  %v117 = vmax.f32 %v63, 0.0
  %v118 = vadd.f32 %v117, %v116
  %v119 = vsub.f32 0.0, %v63
  %v120 = vmax.f32 %v119, 0.0
  %v121 = vadd.f32 %v120, %v116
  %v122 = vmul.f32 %v109, %v64
  %v123 = vmul.f32 %v96, %v121
  %125 = vst [vmem:[#allocation1] ss:$4 sm:$0xff] %v118
  %v126 = vld.sshfl [vmem:[#allocation1] sm:$0xff pattern:$0x73625140]
  %v127 = vld.sshfl [vmem:[#allocation1 + $0x8] sm:$0xff pattern:$0x73625140]
  %v128 = vld.sshfl [vmem:[#allocation1 + $0x10] sm:$0xff pattern:$0x73625140]
  %v132 = vmul.f32 %v105, %v126
  %v133 = vmul.f32 %v106, %v127
  %v134 = vmul.f32 %v107, %v128
  %v135 = vmul.f32 %v63, %v96
  %v139 = vrot.slane %v106, 6
  %v140 = vrot.slane %v107, 4
  %v141 = vsel %vm91, %v105, %v139
  %v142 = vsel %vm93, %v141, %v140
  %v144 = vmul.f32 %v63, %v142
  %v145 = vrot.slane %v96, 2
  %v147 = vadd.f32 %v96, %v145
  %v148 = vrot.slane %v96, 4
  %v150 = vadd.f32 %v147, %v148
  %v152 = vrot.slane %v122, 2
  %v154 = vadd.f32 %v122, %v152
  %v155 = vrot.slane %v122, 4
  %v157 = vadd.f32 %v154, %v155
  %v159 = vrot.slane %v109, 2
  %v161 = vadd.f32 %v109, %v159
  %v162 = vrot.slane %v109, 4
  %v164 = vadd.f32 %v161, %v162
  %v166 = vrot.slane %v123, 2
  %v168 = vadd.f32 %v123, %v166
  %v169 = vrot.slane %v123, 4
  %v171 = vadd.f32 %v168, %v169
  %v172 = vadd.f32 %v132, %v133
  %v173 = vadd.f32 %v172, %v134
  %v175 = vrot.slane %v135, 2
  %v177 = vadd.f32 %v135, %v175
  %v178 = vrot.slane %v135, 4
  %v180 = vadd.f32 %v177, %v178
  %v182 = vrot.slane %v144, 2
  %v184 = vadd.f32 %v144, %v182
  %v185 = vrot.slane %v144, 4
  %v187 = vadd.f32 %v184, %v185
  %v188 = vadd.f32 %v83, %v84
  %v189 = vadd.f32 %v188, %v85
  %v190 = vld [vmem:[%s3] sm:$0xff]
  %v191 = vld [vmem:[%s3 + $0x8] sm:$0xff]
  %v200 = vrot.slane %v157, 6
  %v201 = vrot.slane %v164, 4
  %v202 = vrot.slane %v171, 2
  %v203 = vrot.slane %v180, 6
  %v204 = vrot.slane %v187, 4
  %v205 = vrot.slane %v189, 2
  %v206 = vsel %vm91, %v150, %v200
  %vm207 = vcmask 1045508
  %v208 = vsel %vm207, %v201, %v202
  %v209 = vsel %vm93, %v206, %v208
  %v210 = vsel %vm91, %v173, %v203
  %v211 = vsel %vm207, %v204, %v205
  %v212 = vsel %vm93, %v210, %v211
  %v215 = vadd.f32 %v190, %v209
  %v216 = vadd.f32 %v191, %v212
  %217 = vst [vmem:[%s3] sm:$0xff] %v215
  %218 = vst [vmem:[%s3 + $0x8] sm:$0xff] %v216
  // Predicated region
  $region14: #{_classification_loss_impl.1} parent=0 // pred_check
    _
  $region15: #{_classification_loss_impl.1} parent=0 // pred_check_branch
    %220 = sbr.rel (0) target = $region17
  $region16: #{_classification_loss_impl.1} parent=0 // pred_region
    _
  $region17: #{_classification_loss_impl.1} parent=0 // pred_fallthru
    _
  // Predicated region
  $region18: #{_classification_loss_impl.1} parent=0 // pred_check
    _
  $region19: #{_classification_loss_impl.1} parent=0 // pred_check_branch
    %222 = sbr.rel (0) target = $region21
  $region20: #{_classification_loss_impl.1} parent=0 // pred_region
    _
  $region21: #{_classification_loss_impl.1} parent=0 // pred_fallthru
    _

</llo_original>
